<compile_context>
chip_gen: v7x
topology: tpu7x:2x2x1
jax: 0.10.0
libtpu: 0.0.40
codegen_flags: <defaults>
</compile_context>

<pallas_src>
from functools import partial

import jax
import jax.numpy as jnp
from jax.experimental import pallas as pl
from jax.experimental.pallas import tpu as pltpu


def _round_up(x: int, m: int) -> int:
    return ((x + m - 1) // m) * m


def mlp_kernel(xt_ref, wt_ref, bt_ref, ot_ref):
    # xt_ref : (IN, TN)       -- one lane-dense column tile of x^T
    # wt_ref : (OUT_PAD, IN)  -- folded W^T, resident in VMEM
    # bt_ref : (OUT_PAD, 1)   -- folded b^T, resident in VMEM
    # ot_ref : (OUT_PAD, TN)  -- y^T tile (8 sublanes, TN lanes)
    xt = xt_ref[...]
    in_dim = xt.shape[0]  # static (3) -> loop fully unrolled at trace time

    # Single hoisted bias broadcast per tile (lane-broadcast of an (8,1) col).
    acc = jnp.broadcast_to(bt_ref[...], ot_ref.shape).astype(jnp.float32)

    # K=3 contraction as unrolled VPU broadcast-FMAs:
    #   acc[f, j] += W^T[f, k] * x^T[k, j]
    for k in range(in_dim):
        acc = acc + wt_ref[:, k:k + 1] * xt[k:k + 1, :]

    ot_ref[...] = acc.astype(ot_ref.dtype)


def fold_params(w1, b1, w2, b2):
    """Fold the two bias-only linear layers into one affine map, transposed and
    sublane-padded for the kernel.  Call ONCE; outputs are reused per call."""
    w = w1 @ w2                    # (IN, OUT)
    b = b1 @ w2 + b2               # (1, OUT)
    out_dim = w.shape[1]
    out_pad = _round_up(out_dim, 8)
    wt = jnp.pad(w.T, ((0, out_pad - out_dim), (0, 0)))   # (OUT_PAD, IN)
    bt = jnp.pad(b.T, ((0, out_pad - out_dim), (0, 0)))   # (OUT_PAD, 1)
    return wt, bt, out_dim


@partial(jax.jit, static_argnames=("out_dim", "tn"))
def mlp_forward(x, wt_pad, bt_pad, *, out_dim, tn=1024):
    """y = x @ (w1 @ w2) + (b1 @ w2 + b2), computed transposed in the kernel."""
    n, in_dim = x.shape
    out_pad = wt_pad.shape[0]

    # Lane-dense layout: N becomes the lane axis.
    xt = x.T                                   # (IN, N)

    # Lane-tile selection:
    #  - tiny N: one full-extent block (lane dim == array dim is allowed);
    #  - otherwise: multiple-of-128 tile, capped so grid >= 2 steps so that
    #    "parallel" semantics can use both v7x TensorCores.
    if n <= 128:
        tile = n
    else:
        half = _round_up(-(-n // 2), 128)
        tile = max(128, min(tn, half))
    grid = (pl.cdiv(n, tile),)

    # VMEM per step (double-buffered): x tile (3, tile) + out tile (8, tile)
    # in f32 -> ~88 KiB at tile=1024; trivially under scoped VMEM on all gens.
    out_t = pl.pallas_call(
        mlp_kernel,
        out_shape=jax.ShapeDtypeStruct((out_pad, n), x.dtype),
        grid=grid,
        in_specs=[
            pl.BlockSpec((in_dim, tile), lambda i: (0, i)),    # streamed x^T
            pl.BlockSpec((out_pad, in_dim), lambda i: (0, 0)),  # resident W^T
            pl.BlockSpec((out_pad, 1), lambda i: (0, 0)),       # resident b^T
        ],
        out_specs=pl.BlockSpec((out_pad, tile), lambda i: (0, i)),
        compiler_params=pltpu.CompilerParams(
            # independent column tiles -> shard grid steps across TCs on v7x
            dimension_semantics=("parallel",)),
    )(xt, wt_pad, bt_pad)

    # Drop the padded sublanes and transpose back to (N, OUT).
    return out_t[:out_dim, :].T


if __name__ == "__main__":
    key = jax.random.PRNGKey(0)
    k_x, k_w1, k_b1, k_w2, k_b2 = jax.random.split(key, 5)

    # Input matching the PyTorch script: x = torch.randn((10, 3))
    x = jax.random.normal(k_x, (10, 3), dtype=jnp.float32)

    # PyTorch-style uniform init with bound 1/sqrt(fan_in).
    bound1 = 1.0 / jnp.sqrt(3.0)
    w1 = jax.random.uniform(k_w1, (3, 4), jnp.float32, -bound1, bound1)
    b1 = jax.random.uniform(k_b1, (1, 4), jnp.float32, -bound1, bound1)
    bound2 = 1.0 / jnp.sqrt(4.0)
    w2 = jax.random.uniform(k_w2, (4, 2), jnp.float32, -bound2, bound2)
    b2 = jax.random.uniform(k_b2, (1, 2), jnp.float32, -bound2, bound2)

    # Fold + pad once (hoisted out of the per-call path).
    wt_pad, bt_pad, out_dim = fold_params(w1, b1, w2, b2)

    out = mlp_forward(x, wt_pad, bt_pad, out_dim=out_dim)
    jax.block_until_ready(out)

    # Reference check against plain JAX (unfolded two-layer form).
    ref = (x @ w1 + b1) @ w2 + b2
    assert out.shape == (10, 2)
    assert jnp.allclose(out, ref, atol=1e-5, rtol=1e-5)

    print("KERNEL_OK")
</pallas_src>

<mosaic_0001>
module attributes {stable_mosaic.version = 11 : i64} {
  func.func @mlp_kernel(%arg0: i32, %arg1: memref<3x10xf32, #tpu.memory_space<vmem>>, %arg2: memref<8x3xf32, #tpu.memory_space<vmem>>, %arg3: memref<8x1xf32, #tpu.memory_space<vmem>>, %arg4: memref<8x10xf32, #tpu.memory_space<vmem>>) attributes {dimension_semantics = [#tpu.dimension_semantics<parallel>], iteration_bounds = array<i64: 1>, scalar_prefetch = 0 : i64, scratch_operands = 0 : i64, tpu.core_type = #tpu.core_type<tc>, window_params = [{transform_indices = @transform_0, window_bounds = array<i64: 3, 10>}, {pipeline_mode = #tpu.pipeline_mode<synchronous>, transform_indices = @transform_1, window_bounds = array<i64: 8, 3>}, {pipeline_mode = #tpu.pipeline_mode<synchronous>, transform_indices = @transform_2, window_bounds = array<i64: 8, 1>}, {transform_indices = @transform_3, window_bounds = array<i64: 8, 10>}]} {
    %c0 = arith.constant 0 : index
    %c0_0 = arith.constant 0 : index
    %0 = vector.load %arg1[%c0, %c0_0] : memref<3x10xf32, #tpu.memory_space<vmem>>, vector<3x10xf32>
    %c0_1 = arith.constant 0 : index
    %c0_2 = arith.constant 0 : index
    %1 = vector.load %arg3[%c0_1, %c0_2] : memref<8x1xf32, #tpu.memory_space<vmem>>, vector<8x1xf32>
    %2 = vector.shape_cast %1 : vector<8x1xf32> to vector<8x1xf32>
    %3 = vector.broadcast %2 : vector<8x1xf32> to vector<8x10xf32>
    %c0_3 = arith.constant 0 : index
    %c0_4 = arith.constant 0 : index
    %4 = vector.load %arg2[%c0_3, %c0_4] : memref<8x3xf32, #tpu.memory_space<vmem>>, vector<8x1xf32>
    %5 = vector.extract_strided_slice %0 {offsets = [0, 0], sizes = [1, 10], strides = [1, 1]} : vector<3x10xf32> to vector<1x10xf32>
    %6 = vector.broadcast %4 : vector<8x1xf32> to vector<8x10xf32>
    %7 = vector.broadcast %5 : vector<1x10xf32> to vector<8x10xf32>
    %8 = arith.mulf %6, %7 : vector<8x10xf32>
    %9 = arith.addf %3, %8 : vector<8x10xf32>
    %c0_5 = arith.constant 0 : index
    %c1 = arith.constant 1 : index
    %10 = vector.load %arg2[%c0_5, %c1] : memref<8x3xf32, #tpu.memory_space<vmem>>, vector<8x1xf32>
    %11 = vector.extract_strided_slice %0 {offsets = [1, 0], sizes = [1, 10], strides = [1, 1]} : vector<3x10xf32> to vector<1x10xf32>
    %12 = vector.broadcast %10 : vector<8x1xf32> to vector<8x10xf32>
    %13 = vector.broadcast %11 : vector<1x10xf32> to vector<8x10xf32>
    %14 = arith.mulf %12, %13 : vector<8x10xf32>
    %15 = arith.addf %9, %14 : vector<8x10xf32>
    %c0_6 = arith.constant 0 : index
    %c2 = arith.constant 2 : index
    %16 = vector.load %arg2[%c0_6, %c2] : memref<8x3xf32, #tpu.memory_space<vmem>>, vector<8x1xf32>
    %17 = vector.extract_strided_slice %0 {offsets = [2, 0], sizes = [1, 10], strides = [1, 1]} : vector<3x10xf32> to vector<1x10xf32>
    %18 = vector.broadcast %16 : vector<8x1xf32> to vector<8x10xf32>
    %19 = vector.broadcast %17 : vector<1x10xf32> to vector<8x10xf32>
    %20 = arith.mulf %18, %19 : vector<8x10xf32>
    %21 = arith.addf %15, %20 : vector<8x10xf32>
    %c0_7 = arith.constant 0 : index
    %c0_8 = arith.constant 0 : index
    %22 = vector.load %arg4[%c0_7, %c0_8] : memref<8x10xf32, #tpu.memory_space<vmem>>, vector<8x10xf32>
    tpu.vector_store %arg4[%c0_7, %c0_8], %21 {strides = array<i32>} : memref<8x10xf32, #tpu.memory_space<vmem>>, vector<8x10xf32>,
    return
  }
  func.func @transform_0(%arg0: i32) -> (i32, i32) {
    %c0_i32 = arith.constant 0 : i32
    %c0_i32_0 = arith.constant 0 : i32
    return %c0_i32, %arg0 : i32, i32
  }
  func.func @transform_1(%arg0: i32) -> (i32, i32) {
    %c0_i32 = arith.constant 0 : i32
    %c0_i32_0 = arith.constant 0 : i32
    %c0_i32_1 = arith.constant 0 : i32
    return %c0_i32, %c0_i32_0 : i32, i32
  }
  func.func @transform_2(%arg0: i32) -> (i32, i32) {
    %c0_i32 = arith.constant 0 : i32
    %c0_i32_0 = arith.constant 0 : i32
    %c0_i32_1 = arith.constant 0 : i32
    return %c0_i32, %c0_i32_0 : i32, i32
  }
  func.func @transform_3(%arg0: i32) -> (i32, i32) {
    %c0_i32 = arith.constant 0 : i32
    %c0_i32_0 = arith.constant 0 : i32
    return %c0_i32, %arg0 : i32, i32
  }
}

</mosaic_0001>

<llo_original>
// kernel: mlp_forward.1
$region0: #{mlp_forward.1}
  #allocation0 [shape = 'u32[]', space=smem, size = 0x4, offset = 0x4, fixed_abs, tag = 'smem constant byte address 0x4 - core index']
  #allocation1 [shape = 'u32[144,128]{1,0:T(1,128)}', space=vmem, size = 0x12000, scoped, tag = 'internal scratch']
  %s0 = inlined_call_operand.vmem [shape: f32[3,10], index: 0, kind: input, shape index: {}]
  %s1 = inlined_call_operand.vmem [shape: f32[8,3], index: 1, kind: input, shape index: {}]
  %s2 = inlined_call_operand.vmem [shape: f32[8,1], index: 2, kind: input, shape index: {}]
  %s3 = inlined_call_operand.vmem [shape: f32[8,10], index: 3, kind: output, shape index: {}]
  %s4 = sld [smem:[#allocation0]]
  $region22: #{mlp_forward.1} parent=0
    _
  %s6 = ssub.s32 1, %s4
  %s7 = scalar_select 0, %s6, %s4
  // Predicated region
  $region2: #{mlp_forward.1} parent=0 // pred_check
    _
  $region3: #{mlp_forward.1} parent=0 // pred_check_branch
    %9 = sbr.rel (0) target = $region5
  $region4: #{mlp_forward.1} parent=0 // pred_region
    _
  $region5: #{mlp_forward.1} parent=0 // pred_fallthru
    _
  // Predicated region
  $region6: #{mlp_forward.1} parent=0 // pred_check
    _
  $region7: #{mlp_forward.1} parent=0 // pred_check_branch
    %11 = sbr.rel (0) target = $region9
  $region8: #{mlp_forward.1} parent=0 // pred_region
    _
  $region9: #{mlp_forward.1} parent=0 // pred_fallthru
    _
  // Predicated region
  $region10: #{mlp_forward.1} parent=0 // pred_check
    _
  $region11: #{mlp_forward.1} parent=0 // pred_check_branch
    %13 = sbr.rel (0) target = $region13
  $region12: #{mlp_forward.1} parent=0 // pred_region
    _
  $region13: #{mlp_forward.1} parent=0 // pred_fallthru
    _
  %v14 = vld [vmem:[%s0] sm:$0x7]
  %v15 = vld [vmem:[%s2] sm:$0xff]
  %17 = vset.pattern.permute.xlu0 0
  %18 = vperm.xlu0 %17, %v15
  %v19 = vpop.permute.xlu0 %18
  %v21 = vld [vmem:[%s1] sm:$0xff]
  %23 = vset.pattern.permute.xlu0 0
  %24 = vperm.xlu0 %23, %v21
  %v25 = vpop.permute.xlu0 %24
  %v27 = vlaneseq
  %v28 = vshrl.u32 %v27, 7
  %v29 = vsub.s32 0, %v28
  %v30 = vrot.slane %v14, %v29
  %v31 = vmul.f32 %v25, %v30
  %v32 = vadd.f32 %v19, %v31
  %33 = vset.pattern.permute.xlu0 1
  %34 = vperm.xlu0 %33, %v21
  %v35 = vpop.permute.xlu0 %34
  %v37 = vlaneseq
  %v38 = vshrl.u32 %v37, 7
  %v39 = vsub.s32 1, %v38
  %v40 = vrot.slane %v14, %v39
  %v41 = vmul.f32 %v35, %v40
  %v42 = vadd.f32 %v32, %v41
  %43 = vset.pattern.permute.xlu0 2
  %44 = vperm.xlu0 %43, %v21
  %v45 = vpop.permute.xlu0 %44
  %v47 = vlaneseq
  %v48 = vshrl.u32 %v47, 7
  %v49 = vsub.s32 2, %v48
  %v50 = vrot.slane %v14, %v49
  %v51 = vmul.f32 %v45, %v50
  %v52 = vadd.f32 %v42, %v51
  %vm53 = vcmask 80896
  %54 = vst.msk [vmem:[%s3] sm:$0xff] %vm53, %v52
  // Predicated region
  $region14: #{mlp_forward.1} parent=0 // pred_check
    _
  $region15: #{mlp_forward.1} parent=0 // pred_check_branch
    %56 = sbr.rel (0) target = $region17
  $region16: #{mlp_forward.1} parent=0 // pred_region
    _
  $region17: #{mlp_forward.1} parent=0 // pred_fallthru
    _
  // Predicated region
  $region18: #{mlp_forward.1} parent=0 // pred_check
    _
  $region19: #{mlp_forward.1} parent=0 // pred_check_branch
    %58 = sbr.rel (0) target = $region21
  $region20: #{mlp_forward.1} parent=0 // pred_region
    _
  $region21: #{mlp_forward.1} parent=0 // pred_fallthru
    _

</llo_original>
